<compile_context>
chip_gen: v7x
topology: tpu7x:2x2x1
jax: 0.10.0
libtpu: 0.0.40
codegen_flags: <defaults>
</compile_context>

<pallas_src>
import functools
import math

import numpy as np

import jax
import jax.numpy as jnp
from jax.experimental import pallas as pl
from jax.experimental.pallas import tpu as pltpu


# ----------------------------------------------------------------------------
# One-time probe: pltpu.roll direction convention (cached Python bool).
# ----------------------------------------------------------------------------

_ROLL_MATCHES_JNP = None


def _roll_matches_jnp_roll():
    """True iff pltpu.roll(x, 1, axis=-1)[..., 0] == x[..., -1] (jnp.roll semantics)."""
    global _ROLL_MATCHES_JNP
    if _ROLL_MATCHES_JNP is None:
        def probe(x_ref, o_ref):
            o_ref[...] = pltpu.roll(x_ref[...], 1, axis=1)
        x = jnp.broadcast_to(jnp.arange(128, dtype=jnp.float32), (8, 128))
        y = pl.pallas_call(
            probe, out_shape=jax.ShapeDtypeStruct((8, 128), jnp.float32))(x)
        _ROLL_MATCHES_JNP = bool(y[0, 0] == 127.0)
    return _ROLL_MATCHES_JNP


# ----------------------------------------------------------------------------
# Fused Pallas kernel: the entire REDNet30_stft forward pass.
# ----------------------------------------------------------------------------

def _rednet_kernel(x_par_ref, w0_ref, wmid_ref, bmid_ref, wlast_ref, blast_ref,
                   caw1_ref, caw2_ref, asa_ref, mask_ref, bmask_ref, negb_ref,
                   out_ref, *, num_layers, n_batch, hl, wl, roll_like_jnp):
    f32 = jnp.float32
    bf16 = jnp.bfloat16
    hw_lo = hl * wl
    m = n_batch * hw_lo
    inv_hw = 1.0 / float(hw_lo)
    nf = out_ref.shape[2]

    # Tap k = (di+1)*3+(dj+1) reads x[..., p + di*wl + dj] (zero outside image).
    # Static lane-roll amounts; direction resolved by the host-side probe.
    def _amt(k):
        s = (k // 3 - 1) * wl + (k % 3 - 1)
        return (-s) % m if roll_like_jnp else s % m
    roll_amt = tuple(_amt(k) for k in range(9))
    masks = [mask_ref[k] if k != 4 else None for k in range(9)]   # (1, M) each

    def tap(x, k):
        # (C, M) -> copy of x shifted by 3x3 tap offset k, zero-padded at image
        # borders.  Roll uses the XLU slot, the mask multiply uses the VPU.
        if k == 4:
            return x
        return masks[k] * pltpu.roll(x, roll_amt[k], axis=1)

    def stack9(x):
        # (C, M) -> (9*C, M) im2col stack, entirely in VMEM.
        # TODO(synk): on v7x, per-tap MRB accumulation (9 small dots) could skip
        # this concat; on v5e/v6e the single K=9*C matmul is preferable.
        return jnp.concatenate([tap(x, t) for t in range(9)], axis=0)

    def conv(wm, st, b):
        # bf16 x bf16 MXU matmul with f32 accumulation; bias/ReLU stay f32.
        return jnp.dot(wm, st.astype(bf16), preferred_element_type=f32) + b

    # -------- encoder layer 0: Conv2d(nf, 2nf, 3, stride=2, pad=1) + ReLU -------
    # Parity decomposition of the strided conv: tap (kh, kw) reads input-parity
    # sub-image tap_par[t] shifted by offset index tap_off[t].
    xp = [[x_par_ref[0, 0], x_par_ref[0, 1]],
          [x_par_ref[1, 0], x_par_ref[1, 1]]]
    tap_par = ((1, 1), (1, 0), (1, 1), (0, 1), (0, 0), (0, 1), (1, 1), (1, 0), (1, 1))
    tap_off = (0, 1, 1, 3, 4, 4, 3, 4, 4)
    st0 = jnp.concatenate(
        [tap(xp[pi][pj], k) for (pi, pj), k in zip(tap_par, tap_off)], axis=0)
    x = jnp.maximum(conv(w0_ref[...], st0, bmid_ref[0]), 0.0)

    # -------- CBAM attention helpers (fused epilogues on the skip path) ---------
    ca_w1 = caw1_ref[...]                       # (2nf, 1)
    ca_w2 = caw2_ref[...]                       # (2nf, 1)
    a_sa = asa_ref[...]                         # (2M, M) bf16
    bmasks = [bmask_ref[n] for n in range(n_batch)]   # (1, M), 1.0 on batch n's lanes
    negbs = [negb_ref[n] for n in range(n_batch)]     # (1, M), -1e30 off-batch, 0 on

    def channel_attention(feat):                # feat: (2nf, M)
        scale = jnp.zeros_like(feat)
        for n in range(n_batch):
            mf = bmasks[n]
            fm = feat * mf                                                      # reused
            avg_n = jnp.sum(fm, axis=1, keepdims=True) * inv_hw                 # (C,1)
            max_n = jnp.max(fm + negbs[n], axis=1, keepdims=True)               # (C,1)
            hid = (jnp.maximum(jnp.sum(avg_n * ca_w1, axis=0, keepdims=True), 0.0) +
                   jnp.maximum(jnp.sum(max_n * ca_w1, axis=0, keepdims=True), 0.0))
            scale = scale + jax.nn.sigmoid(hid * ca_w2) * mf                    # (C,M)
        return feat * scale

    def spatial_attention_gate(z):              # z: (2nf, M)
        avg_c = jnp.mean(z, axis=0, keepdims=True)                              # (1,M)
        max_c = jnp.max(z, axis=0, keepdims=True)                               # (1,M)
        row = jnp.concatenate([avg_c, max_c], axis=1).astype(bf16)              # (1,2M)
        att = jnp.dot(row, a_sa, preferred_element_type=f32)                    # (1,M)
        return jax.nn.sigmoid(att)

    # -------- encoder layers 1 .. num_layers-1 ----------------------------------
    max_feats = math.ceil(num_layers / 2) - 1
    conv_feats = []
    for i in range(1, num_layers):
        x = jnp.maximum(conv(wmid_ref[i - 1], stack9(x), bmid_ref[i]), 0.0)
        if (i + 1) % 2 == 0 and len(conv_feats) < max_feats:
            conv_feats.append(x)

    # -------- decoder layers 0 .. num_layers-2 (stride-1 ConvT + ReLU) ----------
    conv_feats_idx = 0
    for i in range(num_layers - 1):
        x = jnp.maximum(
            conv(wmid_ref[num_layers - 1 + i], stack9(x), bmid_ref[num_layers + i]),
            0.0)
        if (i + 1 + num_layers) % 2 == 0 and conv_feats_idx < len(conv_feats):
            feat = conv_feats[-(conv_feats_idx + 1)]
            conv_feats_idx += 1
            z = channel_attention(feat)
            x = jnp.maximum(x + spatial_attention_gate(z) * z, 0.0)

    # -------- final stride-2 ConvTranspose: ONE fused (4*nf, 9*2nf) matmul ------
    st = stack9(x)
    y = jnp.dot(wlast_ref[...], st.astype(bf16),
                preferred_element_type=f32) + blast_ref[...]                    # (4nf, M)
    for pi in range(2):
        for pj in range(2):
            g = (pi * 2 + pj) * nf
            out_ref[pi, pj, :, :] = jnp.maximum(y[g:g + nf, :] + xp[pi][pj], 0.0)


# ----------------------------------------------------------------------------
# One-time parameter packing (all transforms hoisted out of the forward pass)
# ----------------------------------------------------------------------------

def _build_tap_masks(n_batch, hl, wl):
    # mask[k, 0, flat(n, io, jo)] = 1 iff the 3x3 tap (di, dj) = (k//3-1, k%3-1)
    # stays inside the image for output position (io, jo).
    m = n_batch * hl * wl
    msk = np.zeros((9, 1, m), np.float32)
    for di in (-1, 0, 1):
        for dj in (-1, 0, 1):
            k = (di + 1) * 3 + (dj + 1)
            for n in range(n_batch):
                for io in range(hl):
                    for jo in range(wl):
                        if 0 <= io + di < hl and 0 <= jo + dj < wl:
                            msk[k, 0, n * hl * wl + io * wl + jo] = 1.0
    return jnp.asarray(msk)


def _build_sa_operators(sa_w, n_batch, hl, wl):
    # Conv2d(2, 1, 7, padding=3, bias=False) folded into two (M, M) operators so
    # that  att = avg_row @ A[0] + max_row @ A[1].
    m = n_batch * hl * wl
    a = np.zeros((2, m, m), np.float32)
    saw = np.asarray(sa_w)                                       # (1, 2, 7, 7)
    k = saw.shape[-1]
    r = (k - 1) // 2
    for n in range(n_batch):
        for io in range(hl):
            for jo in range(wl):
                fo = n * hl * wl + io * wl + jo
                for kh in range(k):
                    for kw in range(k):
                        ii, jj = io + kh - r, jo + kw - r
                        if 0 <= ii < hl and 0 <= jj < wl:
                            fi = n * hl * wl + ii * wl + jj
                            a[0, fi, fo] = saw[0, 0, kh, kw]
                            a[1, fi, fo] = saw[0, 1, kh, kw]
    return a


def prepare_fused_params(params, *, num_layers=8, num_features=8,
                         batch=2, height=16, width=16):
    nf, nf2 = num_features, num_features * 2
    hl, wl = height // 2, width // 2
    m = batch * hl * wl
    bf16 = jnp.bfloat16

    def conv_to_mat(w):                          # (Cout, Cin, 3, 3) -> (Cout, 9*Cin)
        cout, cin = w.shape[0], w.shape[1]
        return jnp.reshape(jnp.transpose(w, (0, 2, 3, 1)), (cout, 9 * cin))

    def deconv_s1_to_mat(wt):                    # ConvT(k=3,s=1,p=1) == conv w/ flip
        w_eq = jnp.transpose(wt[:, :, ::-1, ::-1], (1, 0, 2, 3))
        return conv_to_mat(w_eq)

    fp = {}
    fp['w0'] = conv_to_mat(params['conv_w'][0]).astype(bf16)               # (2nf, 9nf)
    wmid = [conv_to_mat(params['conv_w'][i]) for i in range(1, num_layers)]
    wmid += [deconv_s1_to_mat(params['deconv_wt'][i]) for i in range(num_layers - 1)]
    fp['wmid'] = jnp.stack(wmid, axis=0).astype(bf16)                      # (2L-2, 2nf, 18nf)
    bmid = list(params['conv_b']) + list(params['deconv_b'][:num_layers - 1])
    fp['bmid'] = jnp.stack(bmid, axis=0)[:, :, None]                       # (2L-1, 2nf, 1) f32

    # Final ConvTranspose2d(2nf, nf, 3, stride=2, padding=1, output_padding=1):
    # output-parity decomposition.  Each parity output uses the standard 9-slot
    # shift stack with the contributing ConvT taps placed at the slot of their
    # input shift (unused slots stay zero).  Fused into one (4*nf, 9*2nf) matrix.
    wt = np.asarray(params['deconv_wt'][num_layers - 1])                   # (2nf, nf, 3, 3)
    wlast = np.zeros((4, nf, 9, nf2), np.float32)

    def put(p, slot, kh, kw):
        wlast[p, :, slot, :] = wt[:, :, kh, kw].T                          # (nf, 2nf)

    put(0, 4, 1, 1)                                                        # even row, even col
    put(1, 5, 1, 0); put(1, 4, 1, 2)                                       # even row, odd  col
    put(2, 7, 0, 1); put(2, 4, 2, 1)                                       # odd  row, even col
    put(3, 8, 0, 0); put(3, 7, 0, 2); put(3, 5, 2, 0); put(3, 4, 2, 2)     # odd, odd
    fp['wlast'] = jnp.asarray(wlast.reshape(4 * nf, 9 * nf2)).astype(bf16)
    fp['blast'] = jnp.tile(params['deconv_b'][num_layers - 1][:, None], (4, 1))  # (4nf,1) f32

    fp['caw1'] = jnp.reshape(params['ca_w1'], (nf2, 1))
    fp['caw2'] = jnp.reshape(params['ca_w2'], (nf2, 1))
    a_sa = _build_sa_operators(params['sa_w'], batch, hl, wl)
    fp['a_sa'] = jnp.asarray(np.concatenate([a_sa[0], a_sa[1]], axis=0)).astype(bf16)
    fp['tapmask'] = _build_tap_masks(batch, hl, wl)                        # (9, 1, M)

    bmask = np.zeros((batch, 1, m), np.float32)
    for n in range(batch):
        bmask[n, 0, n * hl * wl:(n + 1) * hl * wl] = 1.0
    fp['bmask'] = jnp.asarray(bmask)
    fp['negb'] = jnp.asarray((bmask - 1.0) * 1e30)                         # 0 on-batch, -1e30 off
    return fp


# ----------------------------------------------------------------------------
# Forward wrapper: one reshape/transpose at each end, one pallas_call.
# ----------------------------------------------------------------------------

def _full_spec(shape):
    return pl.BlockSpec(shape, lambda: (0,) * len(shape))


def rednet30_stft_forward(x_nhwc, fused, *, num_layers=8, roll_like_jnp=True):
    """x_nhwc: (N, H, W, C) with C == num_features; returns the same shape."""
    n, h, w, c = x_nhwc.shape
    hl, wl = h // 2, w // 2
    m = n * hl * wl
    # NHWC -> parity-decomposed, lane-dense (2, 2, C, M) layout.
    x_par = jnp.reshape(
        jnp.transpose(jnp.reshape(x_nhwc, (n, hl, 2, wl, 2, c)), (2, 4, 5, 0, 1, 3)),
        (2, 2, c, m))
    operands = (x_par, fused['w0'], fused['wmid'], fused['bmid'], fused['wlast'],
                fused['blast'], fused['caw1'], fused['caw2'], fused['a_sa'],
                fused['tapmask'], fused['bmask'], fused['negb'])
    kernel = functools.partial(_rednet_kernel, num_layers=num_layers,
                               n_batch=n, hl=hl, wl=wl, roll_like_jnp=roll_like_jnp)
    out_par = pl.pallas_call(
        kernel,
        out_shape=jax.ShapeDtypeStruct((2, 2, c, m), jnp.float32),
        in_specs=[_full_spec(op.shape) for op in operands],
        out_specs=_full_spec((2, 2, c, m)),
        compiler_params=pltpu.CompilerParams(vmem_limit_bytes=32 * 1024 * 1024),
    )(*operands)
    # Parity layout -> NHWC.  (Single-core on purpose: at N=2 / M=128 the whole
    # network is a short serial chain of tiny VMEM-resident tiles; a 2-TC grid
    # split would be pure overhead.  Footprint ~0.4 MB << 64 MiB on v7x.)
    out = jnp.reshape(
        jnp.transpose(jnp.reshape(out_par, (2, 2, c, n, hl, wl)), (3, 4, 0, 5, 1, 2)),
        (n, h, w, c))
    return out


# ----------------------------------------------------------------------------
# Synthetic parameters (PyTorch weight layouts)
# ----------------------------------------------------------------------------

def init_params(key, num_layers=8, num_features=8):
    nf, nf2 = num_features, num_features * 2
    keys = iter(jax.random.split(key, 64))

    def nrm(shape, scale=0.05):
        return jax.random.normal(next(keys), shape, jnp.float32) * scale

    p = {}
    conv_w = [nrm((nf2, nf, 3, 3))]              # torch Conv2d weight (Cout, Cin, K, K)
    conv_b = [nrm((nf2,))]
    for _ in range(num_layers - 1):
        conv_w.append(nrm((nf2, nf2, 3, 3)))
        conv_b.append(nrm((nf2,)))
    p['conv_w'], p['conv_b'] = conv_w, conv_b
    deconv_wt, deconv_b = [], []                 # torch ConvTranspose2d (Cin, Cout, K, K)
    for _ in range(num_layers - 1):
        deconv_wt.append(nrm((nf2, nf2, 3, 3)))
        deconv_b.append(nrm((nf2,)))
    deconv_wt.append(nrm((nf2, nf, 3, 3)))
    deconv_b.append(nrm((nf,)))
    p['deconv_wt'], p['deconv_b'] = deconv_wt, deconv_b
    assert nf2 // 16 == 1, "kernel specializes the CA hidden dim to 1 (as in the module)"
    p['ca_w1'] = nrm((nf2 // 16, nf2, 1, 1))     # Conv2d(2nf, 1, 1, bias=False)
    p['ca_w2'] = nrm((nf2, nf2 // 16, 1, 1))     # Conv2d(1, 2nf, 1, bias=False)
    p['sa_w'] = nrm((1, 2, 7, 7))                # Conv2d(2, 1, 7, pad=3, bias=False)
    return p


# ----------------------------------------------------------------------------
# Plain-JAX (XLA) reference of the PyTorch module, for a numerical sanity check
# ----------------------------------------------------------------------------

def _ref_conv(x, w, b, stride, pad):
    out = jax.lax.conv_general_dilated(
        x, jnp.transpose(w, (2, 3, 1, 0)),
        window_strides=(stride, stride), padding=[(pad, pad), (pad, pad)],
        dimension_numbers=('NHWC', 'HWIO', 'NHWC'),
        precision=jax.lax.Precision.HIGHEST)
    return out + b


def _ref_deconv(x, wt, b, stride, pad, out_pad):
    k = wt.shape[-1]
    kern = jnp.transpose(wt[:, :, ::-1, ::-1], (2, 3, 0, 1))
    out = jax.lax.conv_general_dilated(
        x, kern, window_strides=(1, 1),
        padding=[(k - 1 - pad, k - 1 - pad + out_pad)] * 2,
        lhs_dilation=(stride, stride),
        dimension_numbers=('NHWC', 'HWIO', 'NHWC'),
        precision=jax.lax.Precision.HIGHEST)
    return out + b


def _reference_forward(x, params, num_layers=8):
    relu = lambda t: jnp.maximum(t, 0.0)
    residual = x
    feats = []
    max_feats = math.ceil(num_layers / 2) - 1
    for i in range(num_layers):
        x = relu(_ref_conv(x, params['conv_w'][i], params['conv_b'][i],
                           2 if i == 0 else 1, 1))
        if (i + 1) % 2 == 0 and len(feats) < max_feats:
            feats.append(x)
    c2 = x.shape[-1]
    w1 = jnp.reshape(params['ca_w1'], (1, c2))
    w2 = jnp.reshape(params['ca_w2'], (1, c2))
    idx = 0
    for i in range(num_layers):
        if i < num_layers - 1:
            x = relu(_ref_deconv(x, params['deconv_wt'][i], params['deconv_b'][i],
                                 1, 1, 0))
        else:
            x = _ref_deconv(x, params['deconv_wt'][i], params['deconv_b'][i], 2, 1, 1)
        if (i + 1 + num_layers) % 2 == 0 and idx < len(feats):
            f = feats[-(idx + 1)]
            idx += 1
            avg = jnp.mean(f, axis=(1, 2))
            mx = jnp.max(f, axis=(1, 2))
            hid = (relu(jnp.sum(avg * w1, axis=1, keepdims=True)) +
                   relu(jnp.sum(mx * w1, axis=1, keepdims=True)))
            z = f * jax.nn.sigmoid(hid * w2)[:, None, None, :]
            pooled = jnp.concatenate([jnp.mean(z, axis=-1, keepdims=True),
                                      jnp.max(z, axis=-1, keepdims=True)], axis=-1)
            att = _ref_conv(pooled, params['sa_w'], jnp.zeros((1,), jnp.float32), 1, 3)
            x = relu(x + jax.nn.sigmoid(att) * z)
    return relu(x + residual)


# ----------------------------------------------------------------------------

if __name__ == "__main__":
    key = jax.random.PRNGKey(0)
    pkey, xkey = jax.random.split(key)
    params = init_params(pkey)
    fused = prepare_fused_params(params)        # one-time weight packing (outside jit)
    roll_like_jnp = _roll_matches_jnp_roll()    # one-time roll-direction probe

    # PyTorch input would be NCHW (2, 8, 16, 16); this script uses NHWC.
    N, H, W, C = 2, 16, 16, 8
    x = jax.random.normal(xkey, (N, H, W, C), jnp.float32)

    fwd = jax.jit(functools.partial(rednet30_stft_forward,
                                    roll_like_jnp=roll_like_jnp))
    out = fwd(x, fused)
    jax.block_until_ready(out)
    assert out.shape == (N, H, W, C)
    assert bool(jnp.all(jnp.isfinite(out)))

    # Numerical sanity check vs. a plain-XLA reference of the PyTorch module.
    # Tolerance allows for the bf16 matmul inputs (taps are now exact rolls).
    ref = _reference_forward(x, params)
    err = float(jnp.max(jnp.abs(out - ref)))
    assert err < 3e-2, f"fused kernel mismatch vs reference (max abs err {err})"
    print("KERNEL_OK")
</pallas_src>

<mosaic_0001>
module attributes {stable_mosaic.version = 11 : i64} {
  func.func @probe(%arg0: memref<8x128xf32, #tpu.memory_space<vmem>>, %arg1: memref<8x128xf32, #tpu.memory_space<vmem>>) attributes {dimension_semantics = [], scalar_prefetch = 0 : i64, scratch_operands = 0 : i64, tpu.core_type = #tpu.core_type<tc>} {
    %c0 = arith.constant 0 : index
    %c0_0 = arith.constant 0 : index
    %0 = vector.load %arg0[%c0, %c0_0] : memref<8x128xf32, #tpu.memory_space<vmem>>, vector<8x128xf32>
    %c1_i32 = arith.constant 1 : i32
    %1 = tpu.dynamic_rotate %0 by %c1_i32 dim 1 : vector<8x128xf32>, i32 -> vector<8x128xf32>
    %c0_1 = arith.constant 0 : index
    %c0_2 = arith.constant 0 : index
    %2 = vector.load %arg1[%c0_1, %c0_2] : memref<8x128xf32, #tpu.memory_space<vmem>>, vector<8x128xf32>
    tpu.vector_store %arg1[%c0_1, %c0_2], %1 {strides = array<i32>} : memref<8x128xf32, #tpu.memory_space<vmem>>, vector<8x128xf32>,
    return
  }
}

</mosaic_0001>

<llo_original>
// kernel: tpu_custom_call.1
$region0: #{tpu_custom_call.1}
  #allocation0 [shape = 'u32[]', space=smem, size = 0x4, offset = 0x4, fixed_abs, tag = 'smem constant byte address 0x4 - core index']
  #allocation1 [shape = 'u32[144,128]{1,0:T(1,128)}', space=vmem, size = 0x12000, scoped, tag = 'internal scratch']
  %s0 = inlined_call_operand.hbm [shape: f32[8,128], index: 0, kind: input, shape index: {}]
  %s1 = inlined_call_operand.hbm [shape: f32[8,128], index: 1, kind: output, shape index: {}]
  %s2 = sld [smem:[#allocation0]]
  $region18: #{tpu_custom_call.1} parent=0
    _
  %s4 = ssub.s32 1, %s2
  %s5 = scalar_select 0, %s4, %s2
  $region1: #{tpu_custom_call.1} parent=0
    #allocation2 [shape = 'u8[4096]{0}', space=vmem, size = 0x1000, scoped, tag = 'input window, operand 0, single buffered']
    #allocation3 [shape = 's32[1]{0}', space=sflag, size = 0x4, scoped, tag = 'scoped memory for tpu_custom_call.1']
    #allocation4 [shape = 's32[1]{0}', space=sflag, size = 0x4, scoped, tag = 'scoped memory for tpu_custom_call.1']
    #allocation5 [shape = 'u8[4096]{0}', space=vmem, size = 0x1000, scoped, tag = 'output window, operand 0, single buffered']
    %6 = vsyncpa [#allocation3], 0
    %7 = vsyncpa [#allocation4], 0
    // Predicated region
    $region2: #{tpu_custom_call.1} parent=1 // pred_check
      _
    $region3: #{tpu_custom_call.1} parent=1 // pred_check_branch
      %9 = sbr.rel (0) target = $region5
    $region4: #{tpu_custom_call.1} parent=1 // pred_region
      %s11 = ssub.s32 128, 128
      %12 = vsyncadd [#allocation3], %s11
      %s14 = sshll.u32 [#allocation2], 4
      %s15 = int_to_ptr.vmem [resolvable:$true] %s14
      %17 = dma.hbm_to_vmem [thread:$0]  %s0, 128, %s15, [#allocation3]
    $region5: #{tpu_custom_call.1} parent=1 // pred_fallthru
      _
    // Predicated region
    $region6: #{tpu_custom_call.1} parent=1 // pred_check
      _
    $region7: #{tpu_custom_call.1} parent=1 // pred_check_branch
      %19 = sbr.rel (0) target = $region9
    $region8: #{tpu_custom_call.1} parent=1 // pred_region
      %20 = dma.done [#allocation3], 128
    $region9: #{tpu_custom_call.1} parent=1 // pred_fallthru
      _
    %v21 = vld [vmem:[#allocation2] sm:$0xff]
    %22 = vrot.lane.b32.xlu0 %v21, 1
    %v23 = vpop.permute.xlu0 %22
    %24 = vst [vmem:[#allocation5] sm:$0xff] %v23
    // Predicated region
    $region10: #{tpu_custom_call.1} parent=1 // pred_check
      _
    $region11: #{tpu_custom_call.1} parent=1 // pred_check_branch
      %26 = sbr.rel (0) target = $region13
    $region12: #{tpu_custom_call.1} parent=1 // pred_region
      %s28 = ssub.s32 128, 128
      %29 = vsyncadd [#allocation4], %s28
      %s31 = sshll.u32 [#allocation5], 4
      %s32 = int_to_ptr.vmem [resolvable:$true] %s31
      %34 = dma.vmem_to_hbm [thread:$0]  %s32, 128, %s1, [#allocation4]
    $region13: #{tpu_custom_call.1} parent=1 // pred_fallthru
      _
    // Predicated region
    $region14: #{tpu_custom_call.1} parent=1 // pred_check
      _
    $region15: #{tpu_custom_call.1} parent=1 // pred_check_branch
      %36 = sbr.rel (0) target = $region17
    $region16: #{tpu_custom_call.1} parent=1 // pred_region
      %37 = dma.done [#allocation4], 128
    $region17: #{tpu_custom_call.1} parent=1 // pred_fallthru
      _
    %38 = vsyncpa [#allocation3], 1
    %39 = vsyncpa [#allocation4], 1

</llo_original>
